<compile_context>
chip_gen: v6e
topology: v6e:2x2x1
jax: 0.10.0
libtpu: 0.0.40
codegen_flags: <defaults>
</compile_context>

<pallas_src>
import functools
import math

import jax
import jax.numpy as jnp
import numpy as np
from jax import lax
from jax.experimental import pallas as pl
from jax.experimental.pallas import tpu as pltpu


def _round_up(x, m):
    return ((x + m - 1) // m) * m


def _soft_triple_kernel(x_ref, centers_ref, tgt_ref, part_ref, *,
                        la, gamma_inv, gamma, margin, cN, cNp, K):
    i = pl.program_id(1)                     # reduction axis over this core's tiles

    @pl.when(i == 0)
    def _init():
        part_ref[...] = jnp.zeros_like(part_ref)

    x = x_ref[...]                           # (tb, dim)       compute dtype
    centers = centers_ref[...]               # (dim, K*cNp)    compute dtype (pre-normalized)

    # ---- similarity to every sub-center (MXU, f32 accumulation) ----
    sim = jnp.dot(x, centers, preferred_element_type=jnp.float32)   # (tb, K*cNp) f32
    sim_s = sim * gamma_inv                  # scaled once (hoisted out of the K loops)

    # ---- per-class softmax over K sub-centers ----
    # k-major layout => slice k is a lane-aligned (tb, cNp) window at lane k*cNp.
    s = [sim_s[:, k * cNp:(k + 1) * cNp] for k in range(K)]
    m = s[0]
    for k in range(1, K):
        m = jnp.maximum(m, s[k])
    num = jnp.zeros_like(m)
    den = jnp.zeros_like(m)
    for k in range(K):
        e = jnp.exp(s[k] - m)
        den = den + e
        num = num + e * s[k]
    sim_class = (num / den) * gamma          # undo the gamma_inv scaling

    # ---- margin + cross-entropy partial sum for this batch tile ----
    tb = sim_class.shape[0]
    tgt = tgt_ref[...]                                           # (tb, 1) int32
    class_ids = lax.broadcasted_iota(jnp.int32, (tb, cNp), 1)
    onehot = (class_ids == tgt).astype(jnp.float32)              # (tb, cNp)

    logits = la * (sim_class - margin * onehot)
    picked = jnp.sum(logits * onehot, axis=1, keepdims=True)     # before pad-masking
    if cNp != cN:
        logits = jnp.where(class_ids < cN, logits, jnp.float32(-1e30))
    row_max = jnp.max(logits, axis=1, keepdims=True)
    lse = row_max + jnp.log(jnp.sum(jnp.exp(logits - row_max), axis=1, keepdims=True))

    # TODO(synk): padded/ragged batches would need a row-validity mask here.
    part_ref[...] = part_ref[...] + jnp.sum(lse - picked)        # scalar broadcast add


def soft_triple_loss(x, target, fc, *, la, gamma, tau, margin, cN, K,
                     block_b=512, num_partials=2, class_lane_pad=128,
                     compute_dtype=jnp.bfloat16):
    """Pallas implementation of SoftTriple.forward. Returns scalar f32 loss."""
    B, dim = x.shape
    assert fc.shape == (dim, cN * K)
    gamma_inv = 1.0 / gamma                  # matches `self.gamma = 1.0 / gamma`

    tb = min(block_b, B)
    assert B % tb == 0, "batch must be divisible by the batch tile"
    assert tb == B or tb % 8 == 0, "batch tile must be sublane-aligned"
    nb = B // tb

    # Partial-sum rows: one per TensorCore on v7x (leading "parallel" axis);
    # on 1-TC chips the extra axis is just a short sequential loop.
    nc = 1
    for cand in range(min(num_partials, nb), 0, -1):
        if nb % cand == 0:
            nc = cand
            break
    nb_per = nb // nc

    # ---- wrapper-side prep (once per call, tiny) ----
    # 1) L2-normalize sub-centers in f32 (F.normalize, eps=1e-12).
    norm = jnp.sqrt(jnp.sum(fc * fc, axis=0, keepdims=True))
    centers_f32 = fc / jnp.maximum(norm, 1e-12)                  # (dim, cN*K)

    # 2) k-major + lane-pad cN -> each per-class slice is 128-lane aligned;
    #    cast once to the MXU compute dtype (single resident operand).
    cNp = _round_up(cN, class_lane_pad) if class_lane_pad else cN
    ckm = centers_f32.reshape(dim, cN, K).transpose(0, 2, 1)     # (dim, K, cN)
    if cNp != cN:
        ckm = jnp.pad(ckm, ((0, 0), (0, 0), (0, cNp - cN)))
    centers_km = ckm.reshape(dim, K * cNp).astype(compute_dtype)

    x_in = x.astype(compute_dtype)
    tgt = target.astype(jnp.int32).reshape(B, 1)

    # Computed VMEM budget (double-buffered inputs + f32 softmax temporaries),
    # capped at 48 MiB so it stays safe on v7x's 64 MiB physical VMEM.
    isz = jnp.dtype(compute_dtype).itemsize
    need = (2 * tb * dim * isz                 # x tiles (double-buffered)
            + 2 * tb * 128 * 4                 # target tiles (lane-padded)
            + 2 * dim * K * cNp * isz          # resident centers
            + 2 * 8 * 128 * 4                  # output partial-sum block
            + 8 * tb * K * cNp * 4)            # sim + softmax f32 temporaries
    vmem_limit = int(min(max(2 * need, 16 << 20), 48 << 20))

    kernel = functools.partial(_soft_triple_kernel, la=la, gamma_inv=gamma_inv,
                               gamma=gamma, margin=margin, cN=cN, cNp=cNp, K=K)

    out = pl.pallas_call(
        kernel,
        out_shape=jax.ShapeDtypeStruct((nc * 8, 128), jnp.float32),
        grid_spec=pltpu.PrefetchScalarGridSpec(
            num_scalar_prefetch=0,
            grid=(nc, nb_per),
            in_specs=[
                # TODO(synk): sweep pipeline_mode=pl.Buffered(3) on x/tgt if
                # profiling shows exposed DMA at large B with small cN*K.
                pl.BlockSpec((tb, dim), lambda c, i: (c * nb_per + i, 0)),
                pl.BlockSpec((dim, K * cNp), lambda c, i: (0, 0)),   # resident
                pl.BlockSpec((tb, 1), lambda c, i: (c * nb_per + i, 0)),
            ],
            out_specs=pl.BlockSpec((8, 128), lambda c, i: (c, 0)),
        ),
        compiler_params=pltpu.CompilerParams(
            dimension_semantics=("parallel", "arbitrary"),
            vmem_limit_bytes=vmem_limit),
    )(x_in, centers_km, tgt)

    partials = out[::8, 0]                                       # (nc,)
    loss = jnp.sum(partials) / B

    # ---- sub-center regularizer: x-independent, f32, block-diagonal pairs ----
    if tau > 0 and K > 1:
        c3 = centers_f32.reshape(dim, cN, K)
        reg_sum = jnp.float32(0.0)
        for k in range(K):
            for l in range(k + 1, K):
                dots = jnp.sum(c3[:, :, k] * c3[:, :, l], axis=0)        # (cN,)
                reg_sum = reg_sum + jnp.sum(jnp.sqrt(2.0 + 1e-5 - 2.0 * dots))
        loss = loss + tau * reg_sum / (cN * K * (K - 1.0))
    return loss


def soft_triple_ref(x, target, fc, *, la, gamma, tau, margin, cN, K):
    """Pure-JAX f32 reference mirroring the PyTorch module exactly."""
    gamma_inv = 1.0 / gamma
    norm = jnp.sqrt(jnp.sum(fc * fc, axis=0, keepdims=True))
    centers = fc / jnp.maximum(norm, 1e-12)
    sim = x @ centers
    simStruc = sim.reshape(-1, cN, K)
    prob = jax.nn.softmax(simStruc * gamma_inv, axis=2)
    simClass = jnp.sum(prob * simStruc, axis=2)
    marginM = margin * jax.nn.one_hot(target, cN, dtype=jnp.float32)
    logits = la * (simClass - marginM)
    logZ = jax.scipy.special.logsumexp(logits, axis=1)
    picked = jnp.take_along_axis(logits, target[:, None], axis=1)[:, 0]
    loss = jnp.mean(logZ - picked)
    if tau > 0 and K > 1:
        simCenter = centers.T @ centers
        idx = jnp.arange(cN * K)
        mask = (idx[:, None] // K == idx[None, :] // K) & (idx[None, :] > idx[:, None])
        reg = jnp.sum(jnp.where(mask, jnp.sqrt(2.0 + 1e-5 - 2.0 * simCenter), 0.0)) \
              / (cN * K * (K - 1.0))
        loss = loss + tau * reg
    return loss


def soft_triple_mirror(x, target, fc, *, la, gamma, tau, margin, cN, K,
                       compute_dtype=jnp.bfloat16):
    """Pure-JAX mirror of the kernel's arithmetic (incl. matmul operand dtype)."""
    gamma_inv = 1.0 / gamma
    dim = fc.shape[0]
    norm = jnp.sqrt(jnp.sum(fc * fc, axis=0, keepdims=True))
    centers_f32 = fc / jnp.maximum(norm, 1e-12)
    sim = jnp.dot(x.astype(compute_dtype), centers_f32.astype(compute_dtype),
                  preferred_element_type=jnp.float32)            # (B, cN*K) f32
    simStruc = sim.reshape(-1, cN, K)
    scaled = simStruc * gamma_inv
    m = jnp.max(scaled, axis=2, keepdims=True)
    e = jnp.exp(scaled - m)
    simClass = (jnp.sum(e * scaled, axis=2) / jnp.sum(e, axis=2)) * gamma
    onehot = jax.nn.one_hot(target, cN, dtype=jnp.float32)
    logits = la * (simClass - margin * onehot)
    row_max = jnp.max(logits, axis=1, keepdims=True)
    lse = row_max[:, 0] + jnp.log(jnp.sum(jnp.exp(logits - row_max), axis=1))
    picked = jnp.sum(logits * onehot, axis=1)
    loss = jnp.sum(lse - picked) / x.shape[0]
    if tau > 0 and K > 1:
        c3 = centers_f32.reshape(dim, cN, K)
        reg_sum = jnp.float32(0.0)
        for k in range(K):
            for l in range(k + 1, K):
                dots = jnp.sum(c3[:, :, k] * c3[:, :, l], axis=0)
                reg_sum = reg_sum + jnp.sum(jnp.sqrt(2.0 + 1e-5 - 2.0 * dots))
        loss = loss + tau * reg_sum / (cN * K * (K - 1.0))
    return loss


if __name__ == "__main__":
    # Hyperparameters consistent with the module's __init__ signature.
    la, gamma, tau, margin = 20.0, 0.1, 0.2, 0.01
    dim, cN, K = 32, 4, 3
    B = 32     # 4 batch tiles of 8 -> 2 partial-sum rows x 2 reduction steps each

    key = jax.random.PRNGKey(0)
    kx, kt, kf = jax.random.split(key, 3)

    # Deterministic parameter init (kaiming_uniform_ with a=sqrt(5) on (dim, cN*K)):
    fan_in = cN * K
    bound = math.sqrt(1.0 / 3.0) * math.sqrt(3.0 / fan_in)
    fc = jax.random.uniform(kf, (dim, cN * K), jnp.float32, -bound, bound)

    x = jax.random.normal(kx, (B, dim), jnp.float32)
    target = jax.random.randint(kt, (B,), 0, cN, jnp.int32)

    kw = dict(la=la, gamma=gamma, tau=tau, margin=margin, cN=cN, K=K)

    # 1) Perf mode (default): bf16 MXU operands, tight check against a
    #    pure-JAX mirror of the same arithmetic.
    loss_bf16 = jax.block_until_ready(
        soft_triple_loss(x, target, fc, block_b=8, compute_dtype=jnp.bfloat16, **kw))
    mirror = soft_triple_mirror(x, target, fc, compute_dtype=jnp.bfloat16, **kw)
    np.testing.assert_allclose(np.asarray(loss_bf16), np.asarray(mirror),
                               rtol=5e-4, atol=5e-4)

    # 2) Exact-semantics mode: f32 operands vs the PyTorch-module reference.
    loss_f32 = jax.block_until_ready(
        soft_triple_loss(x, target, fc, block_b=8, compute_dtype=jnp.float32, **kw))
    ref = soft_triple_ref(x, target, fc, **kw)
    np.testing.assert_allclose(np.asarray(loss_f32), np.asarray(ref),
                               rtol=1e-3, atol=1e-3)

    # bf16 run should also land close to the f32 module value (loose sanity check).
    np.testing.assert_allclose(np.asarray(loss_bf16), np.asarray(ref),
                               rtol=5e-2, atol=5e-2)

    print("KERNEL_OK")
</pallas_src>

<mosaic_0001>
module attributes {stable_mosaic.version = 11 : i64} {
  func.func @_soft_triple_kernel(%arg0: i32, %arg1: i32, %arg2: memref<8x32xbf16, #tpu.memory_space<vmem>>, %arg3: memref<32x384xbf16, #tpu.memory_space<vmem>>, %arg4: memref<8x1xi32, #tpu.memory_space<vmem>>, %arg5: memref<8x128xf32, #tpu.memory_space<vmem>>) attributes {dimension_semantics = [#tpu.dimension_semantics<parallel>, #tpu.dimension_semantics<arbitrary>], iteration_bounds = array<i64: 2, 2>, scalar_prefetch = 0 : i64, scratch_operands = 0 : i64, tpu.core_type = #tpu.core_type<tc>, window_params = [{transform_indices = @transform_0, window_bounds = array<i64: 8, 32>}, {pipeline_mode = #tpu.pipeline_mode<synchronous>, transform_indices = @transform_1, window_bounds = array<i64: 32, 384>}, {transform_indices = @transform_2, window_bounds = array<i64: 8, 1>}, {transform_indices = @transform_3, window_bounds = array<i64: 8, 128>}]} {
    %c0_i32 = arith.constant 0 : i32
    %0 = arith.cmpi eq, %arg1, %c0_i32 : i32
    %1 = arith.extui %0 : i1 to i32
    %c0_i32_0 = arith.constant 0 : i32
    %2 = arith.cmpi ne, %1, %c0_i32_0 : i32
    scf.if %2 {
      %cst_21 = arith.constant 0.000000e+00 : f32
      %69 = vector.broadcast %cst_21 : f32 to vector<8x128xf32>
      %c0_22 = arith.constant 0 : index
      %c0_23 = arith.constant 0 : index
      %70 = vector.load %arg5[%c0_22, %c0_23] : memref<8x128xf32, #tpu.memory_space<vmem>>, vector<8x128xf32>
      tpu.vector_store %arg5[%c0_22, %c0_23], %69 {strides = array<i32>} : memref<8x128xf32, #tpu.memory_space<vmem>>, vector<8x128xf32>,
    } else {
    }
    %c0 = arith.constant 0 : index
    %c0_1 = arith.constant 0 : index
    %3 = vector.load %arg2[%c0, %c0_1] : memref<8x32xbf16, #tpu.memory_space<vmem>>, vector<8x32xbf16>
    %c0_2 = arith.constant 0 : index
    %c0_3 = arith.constant 0 : index
    %4 = vector.load %arg3[%c0_2, %c0_3] : memref<32x384xbf16, #tpu.memory_space<vmem>>, vector<32x384xbf16>
    %cst = arith.constant dense<0.000000e+00> : vector<8x384xf32>
    %5 = tpu.matmul %3, %4, %cst {dimension_numbers = #tpu.dot_dimension_numbers<[1], [0], [0], [1], [0, 0, 1, 1], [], []>} : vector<8x32xbf16>, vector<32x384xbf16>, vector<8x384xf32> -> vector<8x384xf32>
    %cst_4 = arith.constant 1.000000e+01 : f32
    %6 = vector.broadcast %cst_4 : f32 to vector<8x384xf32>
    %7 = arith.mulf %5, %6 : vector<8x384xf32>
    %8 = vector.extract_strided_slice %7 {offsets = [0, 0], sizes = [8, 128], strides = [1, 1]} : vector<8x384xf32> to vector<8x128xf32>
    %9 = vector.extract_strided_slice %7 {offsets = [0, 128], sizes = [8, 128], strides = [1, 1]} : vector<8x384xf32> to vector<8x128xf32>
    %10 = vector.extract_strided_slice %7 {offsets = [0, 256], sizes = [8, 128], strides = [1, 1]} : vector<8x384xf32> to vector<8x128xf32>
    %11 = arith.maximumf %8, %9 : vector<8x128xf32>
    %12 = arith.maximumf %11, %10 : vector<8x128xf32>
    %cst_5 = arith.constant 0.000000e+00 : f32
    %13 = vector.broadcast %cst_5 : f32 to vector<8x128xf32>
    %cst_6 = arith.constant 0.000000e+00 : f32
    %14 = vector.broadcast %cst_6 : f32 to vector<8x128xf32>
    %15 = arith.subf %8, %12 : vector<8x128xf32>
    %16 = math.exp %15 : vector<8x128xf32>
    %17 = arith.addf %14, %16 : vector<8x128xf32>
    %18 = arith.mulf %16, %8 : vector<8x128xf32>
    %19 = arith.addf %13, %18 : vector<8x128xf32>
    %20 = arith.subf %9, %12 : vector<8x128xf32>
    %21 = math.exp %20 : vector<8x128xf32>
    %22 = arith.addf %17, %21 : vector<8x128xf32>
    %23 = arith.mulf %21, %9 : vector<8x128xf32>
    %24 = arith.addf %19, %23 : vector<8x128xf32>
    %25 = arith.subf %10, %12 : vector<8x128xf32>
    %26 = math.exp %25 : vector<8x128xf32>
    %27 = arith.addf %22, %26 : vector<8x128xf32>
    %28 = arith.mulf %26, %10 : vector<8x128xf32>
    %29 = arith.addf %24, %28 : vector<8x128xf32>
    %30 = arith.divf %29, %27 : vector<8x128xf32>
    %cst_7 = arith.constant 1.000000e-01 : f32
    %31 = vector.broadcast %cst_7 : f32 to vector<8x128xf32>
    %32 = arith.mulf %30, %31 : vector<8x128xf32>
    %c0_8 = arith.constant 0 : index
    %c0_9 = arith.constant 0 : index
    %33 = vector.load %arg4[%c0_8, %c0_9] : memref<8x1xi32, #tpu.memory_space<vmem>>, vector<8x1xi32>
    %34 = tpu.iota {dimensions = array<i32: 1>} : vector<8x128xi32>
    %35 = vector.broadcast %33 : vector<8x1xi32> to vector<8x128xi32>
    %36 = arith.cmpi eq, %34, %35 : vector<8x128xi32>
    %37 = arith.extui %36 : vector<8x128xi1> to vector<8x128xi32>
    %38 = arith.sitofp %37 : vector<8x128xi32> to vector<8x128xf32>
    %cst_10 = arith.constant 0.00999999977 : f32
    %39 = vector.broadcast %cst_10 : f32 to vector<8x128xf32>
    %40 = arith.mulf %39, %38 : vector<8x128xf32>
    %41 = arith.subf %32, %40 : vector<8x128xf32>
    %cst_11 = arith.constant 2.000000e+01 : f32
    %42 = vector.broadcast %cst_11 : f32 to vector<8x128xf32>
    %43 = arith.mulf %42, %41 : vector<8x128xf32>
    %44 = arith.mulf %43, %38 : vector<8x128xf32>
    %cst_12 = arith.constant dense<0.000000e+00> : vector<8xf32>
    %45 = vector.multi_reduction <add>, %44, %cst_12 [1] : vector<8x128xf32> to vector<8xf32>
    %46 = vector.shape_cast %45 : vector<8xf32> to vector<8x1xf32>
    %c4_i32 = arith.constant 4 : i32
    %47 = vector.broadcast %c4_i32 : i32 to vector<8x128xi32>
    %48 = arith.cmpi slt, %34, %47 : vector<8x128xi32>
    %cst_13 = arith.constant -1.000000e+30 : f32
    %49 = vector.broadcast %cst_13 : f32 to vector<8x128xf32>
    %50 = arith.select %48, %43, %49 : vector<8x128xi1>, vector<8x128xf32>
    %cst_14 = arith.constant dense<0xFF800000> : vector<8xf32>
    %51 = vector.multi_reduction <maximumf>, %50, %cst_14 [1] : vector<8x128xf32> to vector<8xf32>
    %52 = vector.shape_cast %51 : vector<8xf32> to vector<8x1xf32>
    %53 = vector.broadcast %52 : vector<8x1xf32> to vector<8x128xf32>
    %54 = arith.subf %50, %53 : vector<8x128xf32>
    %55 = math.exp %54 : vector<8x128xf32>
    %cst_15 = arith.constant dense<0.000000e+00> : vector<8xf32>
    %56 = vector.multi_reduction <add>, %55, %cst_15 [1] : vector<8x128xf32> to vector<8xf32>
    %57 = vector.shape_cast %56 : vector<8xf32> to vector<8x1xf32>
    %58 = math.log %57 : vector<8x1xf32>
    %59 = arith.addf %52, %58 : vector<8x1xf32>
    %c0_16 = arith.constant 0 : index
    %c0_17 = arith.constant 0 : index
    %60 = vector.load %arg5[%c0_16, %c0_17] : memref<8x128xf32, #tpu.memory_space<vmem>>, vector<8x128xf32>
    %61 = arith.subf %59, %46 : vector<8x1xf32>
    %62 = vector.shape_cast %61 : vector<8x1xf32> to vector<1x8x1xf32>
    %cst_18 = arith.constant dense<0.000000e+00> : vector<1xf32>
    %63 = vector.multi_reduction <add>, %62, %cst_18 [1, 2] : vector<1x8x1xf32> to vector<1xf32>
    %64 = vector.shape_cast %63 : vector<1xf32> to vector<1x1x1xf32>
    %65 = vector.extract %64[0, 0, 0] : f32 from vector<1x1x1xf32>
    %66 = vector.broadcast %65 : f32 to vector<8x128xf32>
    %67 = arith.addf %60, %66 : vector<8x128xf32>
    %c0_19 = arith.constant 0 : index
    %c0_20 = arith.constant 0 : index
    %68 = vector.load %arg5[%c0_19, %c0_20] : memref<8x128xf32, #tpu.memory_space<vmem>>, vector<8x128xf32>
    tpu.vector_store %arg5[%c0_19, %c0_20], %67 {strides = array<i32>} : memref<8x128xf32, #tpu.memory_space<vmem>>, vector<8x128xf32>,
    return
  }
  func.func @transform_0(%arg0: i32, %arg1: i32) -> (i32, i32) {
    %c2_i32 = arith.constant 2 : i32
    %0 = arith.muli %arg0, %c2_i32 : i32
    %1 = arith.addi %0, %arg1 : i32
    %c0_i32 = arith.constant 0 : i32
    %c0_i32_0 = arith.constant 0 : i32
    return %1, %c0_i32 : i32, i32
  }
  func.func @transform_1(%arg0: i32, %arg1: i32) -> (i32, i32) {
    %c0_i32 = arith.constant 0 : i32
    %c0_i32_0 = arith.constant 0 : i32
    %c0_i32_1 = arith.constant 0 : i32
    return %c0_i32, %c0_i32_0 : i32, i32
  }
  func.func @transform_2(%arg0: i32, %arg1: i32) -> (i32, i32) {
    %c2_i32 = arith.constant 2 : i32
    %0 = arith.muli %arg0, %c2_i32 : i32
    %1 = arith.addi %0, %arg1 : i32
    %c0_i32 = arith.constant 0 : i32
    %c0_i32_0 = arith.constant 0 : i32
    return %1, %c0_i32 : i32, i32
  }
  func.func @transform_3(%arg0: i32, %arg1: i32) -> (i32, i32) {
    %c0_i32 = arith.constant 0 : i32
    %c0_i32_0 = arith.constant 0 : i32
    return %arg0, %c0_i32 : i32, i32
  }
}

</mosaic_0001>

<llo_original>
// kernel: tpu_custom_call.1
$region0: #{tpu_custom_call.1}
  #allocation0 [shape = 'u32[]', space=smem, size = 0x4, offset = 0x4, fixed_abs, tag = 'smem constant byte address 0x4 - core index']
  #allocation1 [shape = 'u32[144,128]{1,0:T(1,128)}', space=vmem, size = 0x12000, scoped, tag = 'internal scratch']
  %s0 = inlined_call_operand.vmem [shape: bf16[32,32], index: 0, kind: input, shape index: {}]
  %s1 = inlined_call_operand.hbm [shape: bf16[32,384], index: 1, kind: input, shape index: {}]
  %s2 = inlined_call_operand.vmem [shape: s32[32,1], index: 2, kind: input, shape index: {}]
  %s3 = inlined_call_operand.hbm [shape: f32[16,128], index: 3, kind: output, shape index: {}]
  %s4 = sld [smem:[#allocation0]]
  $region53: #{tpu_custom_call.1} parent=0
    _
  %s6 = ssub.s32 1, %s4
  %s7 = scalar_select 0, %s6, %s4
  $region1: #{tpu_custom_call.1} parent=0
    #allocation2 [shape = 'u8[24576]{0}', space=vmem, size = 0x6000, scoped, tag = 'input window, operand 1, single buffered']
    #allocation3 [shape = 's32[2]{0}', space=sflag, size = 0x8, scoped, tag = 'scoped memory for tpu_custom_call.1']
    #allocation4 [shape = 's32[2]{0}', space=sflag, size = 0x8, scoped, tag = 'scoped memory for tpu_custom_call.1']
    #allocation5 [shape = 'u8[8192]{0}', space=vmem, size = 0x2000, scoped, tag = 'output window, operand 0']
    %8 = vsyncpa [#allocation3], 0
    %9 = vsyncpa [#allocation4], 0
    %s10 = scalar_lea.sflag [#allocation4], 1
    %11 = vsyncpa %s10, 0
    loop: start=0, step=1, limit=6
    $region2: #{tpu_custom_call.1} parent=1 // loop_pre_header
      _
    $region3: #{tpu_custom_call.1} parent=1 // loop_header
      %s13 = sphi 0, %s17
      %p14 = scmp.ge.s32.totalorder %s13, 6
      %s20 = sphi 0, %s32
      %s21 = sphi 0, %s28
      %s22 = sphi 0, %s20
      %s23 = sphi 0, %s21
      %s24 = sphi 0, %s22
      %s25 = sphi 0, %s23
      %s39 = sphi 0, %s41
      %s42 = sphi 0, %s39
      %s43 = sphi 0, %s42
      %s59 = sphi 0, %s43
      %s63 = sphi 0, %s63
      %s65 = sphi 0, %s63
      %s66 = sphi 0, %s65
      %s80 = sphi 0, %s66
      %s90 = sphi 0, %s92
      %s93 = sphi 0, %s90
      %s94 = sphi 0, %s93
      %s110 = sphi 0, %s94
      %s116 = sphi 0, %s118
      %s119 = sphi 0, %s116
      %s120 = sphi 0, %s119
      %s136 = sphi 0, %s120
    $region4: #{tpu_custom_call.1} parent=1 // loop_header_branch
      %16 = sbr.rel (%p14) target = $region8
    $region5: #{tpu_custom_call.1} parent=1 // loop_body
      %s18 = ssub.s32 %s13, 1
      %s19 = ssub.s32 %s13, 2
      %s26 = sadd.s32 1, %s21
      %p27 = scmp.ge.s32.totalorder %s26, 2
      %s28 = scalar_select %p27, 0, %s26
      %s29 = sadd.s32 1, %s20
      %s30 = scalar_select %p27, %s29, %s20
      %p31 = scmp.ge.s32.totalorder %s30, 2
      %s32 = scalar_select %p31, 0, %s30
      %s33 = smul.u32 %s20, 2
      %s34 = sadd.s32 %s33, %s21
      %s35 = smul.u32 %s32, 2
      %s36 = sadd.s32 %s35, %s28
      %s37 = ssub.s32 %s34, %s36
      %p38 = scmp.eq.s32.totalorder %s37, 0
      %s40 = sadd.s32 %s39, 1
      %s41 = scalar_select %p38, %s39, %s40
      %p44 = pneg %p38
      %p45 = scmp.eq.s32.totalorder %s13, 3
      %p46 = por %p44, %p45
      %p47 = scmp.ne.s32.totalorder %s39, %s42
      %p48 = scmp.eq.s32.totalorder %s13, 0
      %p49 = por %p47, %p48
      %p50 = scmp.ne.s32.totalorder %s39, %s42
      %p51 = scmp.eq.s32.totalorder %s18, 3
      %p52 = por %p50, %p51
      %p53 = scmp.ne.s32.totalorder %s42, %s43
      %p54 = scmp.eq.s32.totalorder %s18, 0
      %p55 = por %p53, %p54
      %p56 = scmp.ne.s32.totalorder %s42, %s43
      %p57 = scmp.eq.s32.totalorder %s19, 3
      %p58 = por %p56, %p57
      %p60 = scmp.ne.s32.totalorder %s43, %s59
      %p61 = scmp.eq.s32.totalorder %s19, 0
      %p62 = por %p60, %p61
      %s64 = sadd.s32 %s63, 1
      %p67 = scmp.eq.s32.totalorder %s13, 3
      %p68 = scmp.ne.s32.totalorder %s63, %s65
      %p69 = scmp.eq.s32.totalorder %s13, 0
      %p70 = por %p68, %p69
      %p71 = scmp.ne.s32.totalorder %s63, %s65
      %p72 = scmp.eq.s32.totalorder %s18, 3
      %p73 = por %p71, %p72
      %p74 = scmp.ne.s32.totalorder %s65, %s66
      %p75 = scmp.eq.s32.totalorder %s18, 0
      %p76 = por %p74, %p75
      %p77 = scmp.ne.s32.totalorder %s65, %s66
      %p78 = scmp.eq.s32.totalorder %s19, 3
      %p79 = por %p77, %p78
      %p81 = scmp.ne.s32.totalorder %s66, %s80
      %p82 = scmp.eq.s32.totalorder %s19, 0
      %p83 = por %p81, %p82
      %s84 = smul.u32 %s20, 2
      %s85 = sadd.s32 %s84, %s21
      %s86 = smul.u32 %s32, 2
      %s87 = sadd.s32 %s86, %s28
      %s88 = ssub.s32 %s85, %s87
      %p89 = scmp.eq.s32.totalorder %s88, 0
      %s91 = sadd.s32 %s90, 1
      %s92 = scalar_select %p89, %s90, %s91
      %p95 = pneg %p89
      %p96 = scmp.eq.s32.totalorder %s13, 3
      %p97 = por %p95, %p96
      %p98 = scmp.ne.s32.totalorder %s90, %s93
      %p99 = scmp.eq.s32.totalorder %s13, 0
      %p100 = por %p98, %p99
      %p101 = scmp.ne.s32.totalorder %s90, %s93
      %p102 = scmp.eq.s32.totalorder %s18, 3
      %p103 = por %p101, %p102
      %p104 = scmp.ne.s32.totalorder %s93, %s94
      %p105 = scmp.eq.s32.totalorder %s18, 0
      %p106 = por %p104, %p105
      %p107 = scmp.ne.s32.totalorder %s93, %s94
      %p108 = scmp.eq.s32.totalorder %s19, 3
      %p109 = por %p107, %p108
      %p111 = scmp.ne.s32.totalorder %s94, %s110
      %p112 = scmp.eq.s32.totalorder %s19, 0
      %p113 = por %p111, %p112
      %s114 = ssub.s32 %s20, %s32
      %p115 = scmp.eq.s32.totalorder %s114, 0
      %s117 = sadd.s32 %s116, 1
      %s118 = scalar_select %p115, %s116, %s117
      %p121 = pneg %p115
      %p122 = scmp.eq.s32.totalorder %s13, 3
      %p123 = por %p121, %p122
      %p124 = scmp.ne.s32.totalorder %s116, %s119
      %p125 = scmp.eq.s32.totalorder %s13, 0
      %p126 = por %p124, %p125
      %p127 = scmp.ne.s32.totalorder %s116, %s119
      %p128 = scmp.eq.s32.totalorder %s18, 3
      %p129 = por %p127, %p128
      %p130 = scmp.ne.s32.totalorder %s119, %s120
      %p131 = scmp.eq.s32.totalorder %s18, 0
      %p132 = por %p130, %p131
      %p133 = scmp.ne.s32.totalorder %s119, %s120
      %p134 = scmp.eq.s32.totalorder %s19, 3
      %p135 = por %p133, %p134
      %p137 = scmp.ne.s32.totalorder %s120, %s136
      %p138 = scmp.eq.s32.totalorder %s19, 0
      %p139 = por %p137, %p138
      %p140 = scmp.le.s32.totalorder 1, %s13
      %p141 = scmp.lt.s32.totalorder %s13, 5
      %p142 = pnand %p140, %p141
      %p143 = pneg %p142
      // Predicated region
      $region9: #{tpu_custom_call.1} parent=5 // pred_check
        _
      $region10: #{tpu_custom_call.1} parent=5 // pred_check_branch
        %145 = sbr.rel (%p142) target = $region12
      $region11: #{tpu_custom_call.1} parent=5 // pred_region
        %s146 = ssub.s32 %s13, 1
        // Predicated region
        $region13: #{tpu_custom_call.1} parent=11 // pred_check
          %p147 = pneg %p76
        $region14: #{tpu_custom_call.1} parent=11 // pred_check_branch
          %149 = sbr.rel (%p147) target = $region16
        $region15: #{tpu_custom_call.1} parent=11 // pred_region
          %s151 = ssub.s32 768, 768
          %152 = vsyncadd [#allocation3], %s151
          %s153 = sshll.u32 [#allocation2], 4
          %s154 = int_to_ptr.vmem [resolvable:$true] %s153
          %159 = dma.hbm_to_vmem [thread:$0]  %s1, 768, %s154, [#allocation3], 192, 192, 12
        $region16: #{tpu_custom_call.1} parent=11 // pred_fallthru
          _
      $region12: #{tpu_custom_call.1} parent=5 // pred_fallthru
        _
      %p160 = scmp.lt.s32.totalorder %s13, 4
      // Predicated region
      $region17: #{tpu_custom_call.1} parent=5 // pred_check
        %p161 = pneg %p160
      $region18: #{tpu_custom_call.1} parent=5 // pred_check_branch
        %163 = sbr.rel (%p161) target = $region20
      $region19: #{tpu_custom_call.1} parent=5 // pred_region
        // Predicated region
        $region21: #{tpu_custom_call.1} parent=19 // pred_check
          %p164 = pneg %p49
        $region22: #{tpu_custom_call.1} parent=19 // pred_check_branch
          %166 = sbr.rel (%p164) target = $region24
        $region23: #{tpu_custom_call.1} parent=19 // pred_region
          %s167 = smul.u32 %s20, 2
          %s168 = sadd.s32 %s167, %s21
          %p169 = scmp.lt.s32.totalorder %s168, 3
          %s170 = scalar_select %p169, %s168, 3
          %s171 = smul.addr %s170, 4
          %s172 = scalar_lea.vmem %s0, %s171
          %s173 = smul.u32 %s20, 2
          %s174 = sadd.s32 %s173, %s21
        $region24: #{tpu_custom_call.1} parent=19 // pred_fallthru
          _
        // Predicated region
        $region25: #{tpu_custom_call.1} parent=19 // pred_check
          %p175 = pneg %p100
        $region26: #{tpu_custom_call.1} parent=19 // pred_check_branch
          %177 = sbr.rel (%p175) target = $region28
        $region27: #{tpu_custom_call.1} parent=19 // pred_region
          %s178 = smul.u32 %s20, 2
          %s179 = sadd.s32 %s178, %s21
          %p180 = scmp.lt.s32.totalorder %s179, 3
          %s181 = scalar_select %p180, %s179, 3
          %s182 = smul.addr %s181, 8
          %s183 = scalar_lea.vmem %s2, %s182
          %s184 = smul.u32 %s20, 2
          %s185 = sadd.s32 %s184, %s21
        $region28: #{tpu_custom_call.1} parent=19 // pred_fallthru
          _
      $region20: #{tpu_custom_call.1} parent=5 // pred_fallthru
        _
      %p186 = scmp.le.s32.totalorder 1, %s13
      %p187 = scmp.lt.s32.totalorder %s13, 5
      %p188 = pnand %p186, %p187
      %p189 = pneg %p188
      // Predicated region
      $region29: #{tpu_custom_call.1} parent=5 // pred_check
        _
      $region30: #{tpu_custom_call.1} parent=5 // pred_check_branch
        %191 = sbr.rel (%p188) target = $region32
      $region31: #{tpu_custom_call.1} parent=5 // pred_region
        %s192 = ssub.s32 %s13, 1
        // Predicated region
        $region33: #{tpu_custom_call.1} parent=31 // pred_check
          %p193 = pneg %p76
        $region34: #{tpu_custom_call.1} parent=31 // pred_check_branch
          %195 = sbr.rel (%p193) target = $region36
        $region35: #{tpu_custom_call.1} parent=31 // pred_region
          %196 = dma.done [#allocation3], 768
        $region36: #{tpu_custom_call.1} parent=31 // pred_fallthru
          _
        %s197 = smul.u32 %s22, 2
        %s198 = sadd.s32 %s197, %s23
        %p199 = scmp.lt.s32.totalorder %s198, 3
        %s200 = scalar_select %p199, %s198, 3
        %s201 = smul.addr %s200, 4
        %s202 = scalar_lea.vmem %s0, %s201
        %p203 = pneg %p55
        %p204 = pneg %p52
        %p205 = pneg %p76
        %p206 = pneg %p73
        %s207 = smul.u32 %s22, 2
        %s208 = sadd.s32 %s207, %s23
        %p209 = scmp.lt.s32.totalorder %s208, 3
        %s210 = scalar_select %p209, %s208, 3
        %s211 = smul.addr %s210, 8
        %s212 = scalar_lea.vmem %s2, %s211
        %p213 = pneg %p106
        %p214 = pneg %p103
        %p215 = pneg %p132
        %p216 = pneg %p129
        %s217 = sand.u32 %s119, 1
        %s218 = scalar_lea.sflag [#allocation4], %s217
        %s219 = sand.u32 %s119, 1
        %s220 = smul.addr %s219, 8
        %s221 = scalar_lea.vmem [#allocation5], %s220
        %s222 = smul.u32 %s22, 2
        %s223 = sadd.s32 %s222, %s23
        %p224 = scmp.lt.s32.totalorder %s223, 3
        %s225 = scalar_select %p224, %s223, 3
        %s226 = smul.addr %s225, 4
        %s227 = scalar_lea.vmem %s0, %s226
        %s228 = smul.u32 %s22, 2
        %s229 = sadd.s32 %s228, %s23
        %s230 = smul.u32 %s22, 2
        %s231 = sadd.s32 %s230, %s23
        %p232 = scmp.lt.s32.totalorder %s231, 3
        %s233 = scalar_select %p232, %s231, 3
        %s234 = smul.addr %s233, 8
        %s235 = scalar_lea.vmem %s2, %s234
        %s236 = smul.u32 %s22, 2
        %s237 = sadd.s32 %s236, %s23
        %p239 = scmp.eq.s32.totalorder %s23, 0
        // Predicated region
        $region37: #{tpu_custom_call.1} parent=31 // pred_check
          %p240 = pneg %p239
        $region38: #{tpu_custom_call.1} parent=31 // pred_check_branch
          %242 = sbr.rel (%p240) target = $region40
        $region39: #{tpu_custom_call.1} parent=31 // pred_region
          %243 = vst [vmem:[%s221] sm:$0xff] 0.0
        $region40: #{tpu_custom_call.1} parent=31 // pred_fallthru
          _
        %v244 = vld [vmem:[%s227] sm:$0xf]
        %v245 = vld [vmem:[#allocation2] sm:$0xff]
        %v246 = vld [vmem:[#allocation2 + $0x8] sm:$0xf]
        %v247 = vld [vmem:[#allocation2 + $0xc] sm:$0xff]
        %v248 = vld [vmem:[#allocation2 + $0x14] sm:$0xf]
        %v249 = vld [vmem:[#allocation2 + $0x18] sm:$0xff]
        %v250 = vld [vmem:[#allocation2 + $0x20] sm:$0xf]
        %v251 = vld [vmem:[#allocation2 + $0x24] sm:$0xff]
        %v252 = vld [vmem:[#allocation2 + $0x2c] sm:$0xf]
        %v261 = vunpack.c.l.b16 %v245
        %v262 = vunpack.c.h.b16 %v245
        %v263 = vunpack.c.l.b16 %v246
        %v264 = vunpack.c.l.b16 %v247
        %v265 = vunpack.c.h.b16 %v247
        %v266 = vunpack.c.l.b16 %v248
        %v267 = vunpack.c.l.b16 %v249
        %v268 = vunpack.c.h.b16 %v249
        %v269 = vunpack.c.l.b16 %v250
        %v270 = vunpack.c.l.b16 %v251
        %v271 = vunpack.c.h.b16 %v251
        %v272 = vunpack.c.l.b16 %v252
        %v273 = vpack.c.b16 %v264, %v261
        %v274 = vpack.c.b16 %v265, %v262
        %v275 = vpack.c.b16 %v266, %v263
        %v276 = vpack.c.b16 %v270, %v267
        %v277 = vpack.c.b16 %v271, %v268
        %v278 = vpack.c.b16 %v272, %v269
        %vm285 = vcmask 261120
        %v287 = vsel %vm285, %v244, 0
        %289 = vmatprep.subr.bf16.mxu0 0
        %290 = vmatpush1.bf16.msra.mxu0 0
        %291 = vmatprep.subr.bf16.mxu0 0
        %292 = vmatpush1.bf16.msra.mxu0 0
        %293 = vmatprep.subr.bf16.mxu0 0
        %294 = vmatpush1.bf16.msra.mxu0 0
        %295 = vmatprep.subr.bf16.mxu0 0
        %296 = vmatpush1.bf16.msra.mxu0 0
        %297 = vmatprep.subr.bf16.mxu0 0
        %298 = vmatpush1.bf16.msra.mxu0 0
        %299 = vmatprep.subr.bf16.mxu0 0
        %300 = vmatpush1.bf16.msra.mxu0 0
        %301 = vmatprep.subr.bf16.mxu0 %v277
        %302 = vmatpush1.bf16.msra.mxu0 %v276
        %303 = vmatprep.subr.bf16.mxu0 %v274
        %304 = vmatpush1.bf16.msra.mxu0 %v273
        %305 = vmatprep.subr.bf16.mxu0 0
        %306 = vmatpush2.bf16.msra.mxu0 0
        %307 = vmatprep.subr.bf16.mxu0 0
        %308 = vmatpush2.bf16.msra.mxu0 0
        %309 = vmatprep.subr.bf16.mxu0 0
        %310 = vmatpush2.bf16.msra.mxu0 0
        %311 = vmatprep.subr.bf16.mxu0 0
        %312 = vmatpush2.bf16.msra.mxu0 0
        %313 = vmatprep.subr.bf16.mxu0 0
        %314 = vmatpush2.bf16.msra.mxu0 0
        %315 = vmatprep.subr.bf16.mxu0 0
        %316 = vmatpush2.bf16.msra.mxu0 0
        %317 = vmatprep.subr.bf16.mxu0 0
        %318 = vmatpush2.bf16.msra.mxu0 0
        %319 = vmatprep.subr.bf16.mxu0 0
        %320 = vmatpush2.bf16.msra.mxu0 0
        %321 = vmatprep.mubr.bf16.mxu0 0
        %322 = vmatmul.mubr.bf16.gmra.mxu0 %v287
        %v323 = vpop.f32.mrf.mxu0
        %v324 = vadd.f32 0.0, %v323
        %v325 = vpop.f32.mrf.mxu0
        %v326 = vadd.f32 0.0, %v325
        %v327 = vpop.f32.mrf.mxu0
        %v328 = vpop.f32.mrf.mxu0
        %329 = vdwg.mxu0
        %330 = vmatprep.subr.bf16.mxu0 0
        %331 = vmatpush1.bf16.msra.mxu0 0
        %332 = vmatprep.subr.bf16.mxu0 0
        %333 = vmatpush1.bf16.msra.mxu0 0
        %334 = vmatprep.subr.bf16.mxu0 0
        %335 = vmatpush1.bf16.msra.mxu0 0
        %336 = vmatprep.subr.bf16.mxu0 0
        %337 = vmatpush1.bf16.msra.mxu0 0
        %338 = vmatprep.subr.bf16.mxu0 0
        %339 = vmatpush1.bf16.msra.mxu0 0
        %340 = vmatprep.subr.bf16.mxu0 0
        %341 = vmatpush1.bf16.msra.mxu0 0
        %342 = vmatprep.subr.bf16.mxu0 0
        %343 = vmatpush1.bf16.msra.mxu0 %v278
        %344 = vmatprep.subr.bf16.mxu0 0
        %345 = vmatpush1.bf16.msra.mxu0 %v275
        %346 = vmatprep.subr.bf16.mxu0 0
        %347 = vmatpush2.bf16.msra.mxu0 0
        %348 = vmatprep.subr.bf16.mxu0 0
        %349 = vmatpush2.bf16.msra.mxu0 0
        %350 = vmatprep.subr.bf16.mxu0 0
        %351 = vmatpush2.bf16.msra.mxu0 0
        %352 = vmatprep.subr.bf16.mxu0 0
        %353 = vmatpush2.bf16.msra.mxu0 0
        %354 = vmatprep.subr.bf16.mxu0 0
        %355 = vmatpush2.bf16.msra.mxu0 0
        %356 = vmatprep.subr.bf16.mxu0 0
        %357 = vmatpush2.bf16.msra.mxu0 0
        %358 = vmatprep.subr.bf16.mxu0 0
        %359 = vmatpush2.bf16.msra.mxu0 0
        %360 = vmatprep.subr.bf16.mxu0 0
        %361 = vmatpush2.bf16.msra.mxu0 0
        %362 = vmatprep.mubr.bf16.mxu0 0
        %363 = vmatmul.mubr.bf16.gmra.mxu0 %v287
        %v364 = vpop.f32.mrf.mxu0
        %v365 = vadd.f32 0.0, %v364
        %v366 = vpop.f32.mrf.mxu0
        %v367 = vpop.f32.mrf.mxu0
        %v368 = vpop.f32.mrf.mxu0
        %369 = vdwg.mxu0
        %v370 = vmul.f32 %v324, 10.0
        %v371 = vmul.f32 %v326, 10.0
        %v372 = vmul.f32 %v365, 10.0
        %v373 = vmax.f32 %v370, %v371
        %v374 = vmax.f32 %v373, %v372
        %v375 = vsub.f32 %v370, %v374
        %v376 = vmul.f32 %v375, 1.442695
        %v377 = vpow.pop %v376
        %v378 = vadd.f32 %v377, 0.0
        %v379 = vmul.f32 %v377, %v370
        %v380 = vadd.f32 %v379, 0.0
        %v381 = vsub.f32 %v371, %v374
        %v382 = vmul.f32 %v381, 1.442695
        %v383 = vpow.pop %v382
        %v384 = vadd.f32 %v378, %v383
        %v385 = vmul.f32 %v383, %v371
        %v386 = vadd.f32 %v380, %v385
        %v387 = vsub.f32 %v372, %v374
        %v388 = vmul.f32 %v387, 1.442695
        %v389 = vpow.pop %v388
        %v390 = vadd.f32 %v384, %v389
        %v391 = vmul.f32 %v389, %v372
        %v392 = vadd.f32 %v386, %v391
        %v393 = vrcp.pop %v390
        %v394 = vmul.f32 %v392, %v393
        %v395 = vmul.f32 %v394, 0.1
        %v396 = vld [vmem:[%s235] sm:$0xff]
        %v397 = vlaneseq
        %v398 = vand.u32 %v397, 127
        %399 = vset.pattern.permute.xlu0 0
        %400 = vperm.xlu0 %399, %v396
        %v401 = vpop.permute.xlu0 %400
        %vm402 = vcmp.eq.s32.totalorder %v398, %v401
        %v403 = vsel %vm402, 1, 0
        %v404 = vcvt.s32.f32 %v403
        %v405 = vmul.f32 %v404, 0.01
        %v406 = vsub.f32 %v395, %v405
        %v407 = vmul.f32 %v406, 20.0
        %v408 = vmul.f32 %v407, %v404
        %409 = vadd.xlane.f32.xlu0 %v408
        %v410 = vpop.xlane.xlu0 %409
        %vm411 = vcmp.lt.s32.totalorder %v398, 4
        %v412 = vsel %vm411, %v407, -1e+30
        %413 = vmax.xlane.f32.xlu0 %v412
        %v414 = vpop.xlane.xlu0 %413
        %v415 = vsub.f32 %v412, %v414
        %v416 = vmul.f32 %v415, 1.442695
        %v417 = vpow.pop %v416
        %418 = vadd.xlane.f32.xlu0 %v417
        %v419 = vpop.xlane.xlu0 %418
        %v420 = vlog2.pop %v419
        %v421 = vmul.f32 %v420, 0.6931472
        %v422 = vadd.f32 %v414, %v421
        %v423 = vld [vmem:[%s221] sm:$0xff]
        %v424 = vsub.f32 %v422, %v410
        %vm425 = vcmask 7168
        %v426 = vsel %vm425, %v424, 0.0
        %427 = vadd.xlane.f32.xlu0 %v426
        %v428 = vpop.xlane.xlu0 %427
        %v429 = vrot.slane %v428, 4
        %v430 = vadd.f32 %v428, %v429
        %v431 = vrot.slane %v430, 2
        %v432 = vadd.f32 %v430, %v431
        %v433 = vrot.slane %v432, 1
        %v434 = vadd.f32 %v432, %v433
        %s435 = vtos %v434
        %v436 = vstv %s435
        %v437 = vadd.f32 %v423, %v436
        %438 = vst [vmem:[%s221] sm:$0xff] %v437
        %s439 = sand.u32 %s119, 1
        %s440 = scalar_lea.sflag [#allocation4], %s439
        %s441 = sand.u32 %s119, 1
        %s442 = smul.addr %s441, 8
        %s443 = scalar_lea.vmem [#allocation5], %s442
        // Predicated region
        $region41: #{tpu_custom_call.1} parent=31 // pred_check
          %p444 = pneg %p129
        $region42: #{tpu_custom_call.1} parent=31 // pred_check_branch
          %446 = sbr.rel (%p444) target = $region44
        $region43: #{tpu_custom_call.1} parent=31 // pred_region
          %s448 = ssub.s32 128, 128
          %449 = vsyncadd %s440, %s448
          %s450 = smul.addr %s22, 128
          %s451 = scalar_lea.hbm %s3, %s450
          %s453 = sshll.u32 %s443, 4
          %s454 = int_to_ptr.vmem [resolvable:$true] %s453
          %456 = dma.vmem_to_hbm [thread:$0]  %s454, 128, %s451, %s440
        $region44: #{tpu_custom_call.1} parent=31 // pred_fallthru
          _
      $region32: #{tpu_custom_call.1} parent=5 // pred_fallthru
        _
      %p457 = scmp.le.s32.totalorder 2, %s13
      // Predicated region
      $region45: #{tpu_custom_call.1} parent=5 // pred_check
        %p458 = pneg %p457
      $region46: #{tpu_custom_call.1} parent=5 // pred_check_branch
        %460 = sbr.rel (%p458) target = $region48
      $region47: #{tpu_custom_call.1} parent=5 // pred_region
        %s461 = ssub.s32 %s13, 2
        // Predicated region
        $region49: #{tpu_custom_call.1} parent=47 // pred_check
          %p462 = pneg %p135
        $region50: #{tpu_custom_call.1} parent=47 // pred_check_branch
          %464 = sbr.rel (%p462) target = $region52
        $region51: #{tpu_custom_call.1} parent=47 // pred_region
          %s465 = sand.u32 %s120, 1
          %s466 = scalar_lea.sflag [#allocation4], %s465
          %s467 = sand.u32 %s120, 1
          %s468 = smul.addr %s467, 8
          %s469 = scalar_lea.vmem [#allocation5], %s468
          %470 = dma.done %s466, 128
        $region52: #{tpu_custom_call.1} parent=47 // pred_fallthru
          _
      $region48: #{tpu_custom_call.1} parent=5 // pred_fallthru
        _
    $region6: #{tpu_custom_call.1} parent=1 // loop_footer
      %s17 = sadd.s32 1, %s13
    $region7: #{tpu_custom_call.1} parent=1 // loop_footer_branch
      %12 = sbr.rel target = $region3
    $region8: #{tpu_custom_call.1} parent=1 // loop_exit
      _
    %471 = vsyncpa [#allocation3], 1
    %s472 = scalar_lea.sflag [#allocation3], 1
    %473 = vsyncpa %s472, 1
    %474 = vsyncpa [#allocation4], 1
    %s475 = scalar_lea.sflag [#allocation4], 1
    %476 = vsyncpa %s475, 1

</llo_original>
